<compile_context>
chip_gen: v7x
topology: tpu7x:2x2x1
jax: 0.10.0
libtpu: 0.0.40
codegen_flags: <defaults>
</compile_context>

<pallas_src>
import functools

import jax
import jax.numpy as jnp
from jax.experimental import pallas as pl
from jax.experimental.pallas import tpu as pltpu


def _round_up(x, m):
    return (x + m - 1) // m * m


def _pick_tile(padded_dim, cap, granule):
    """Largest tile <= cap that divides padded_dim (both multiples of granule)."""
    t = max(granule, min(padded_dim, cap))
    t -= t % granule
    while padded_dim % t:
        t -= granule
    return t


def _rnncell_kernel(x_ref, h_ref, wih_ref, whh_ref, b_ref, out_ref, *, activation):
    """One (tb, tn) output tile: two fused MXU dots + bias + activation, f32 accum."""
    cdt = wih_ref.dtype
    acc = jnp.dot(x_ref[...].astype(cdt), wih_ref[...],
                  preferred_element_type=jnp.float32)
    acc = acc + jnp.dot(h_ref[...].astype(cdt), whh_ref[...],
                        preferred_element_type=jnp.float32)
    acc = acc + b_ref[...]                      # (1, tn) f32 bias, broadcasts over rows
    if activation == "tanh":
        out = jnp.tanh(acc)
    elif activation == "relu":
        out = jnp.maximum(acc, 0.0)
    else:  # sigmoid
        out = jax.nn.sigmoid(acc)
    out_ref[...] = out.astype(out_ref.dtype)


def _vmem_capacity_bytes():
    try:
        return int(pltpu.get_tpu_info().vmem_capacity_bytes)
    except Exception:
        return 64 * 1024 * 1024   # v7x per-TC: the smallest of the supported generations


def _rnncell_forward(x, h, w_ih_p, w_hh_p, b_p, *, activation, hidden_size):
    """x: [B, In], h: [B, H]  ->  [B, H] in x.dtype (all shapes static under jit)."""
    B, In = x.shape
    H = h.shape[1]
    Hp = w_ih_p.shape[1]

    xbytes = jnp.dtype(x.dtype).itemsize
    hbytes = jnp.dtype(h.dtype).itemsize
    cbytes = jnp.dtype(w_ih_p.dtype).itemsize
    obytes = xbytes

    # ---- batch tiling: no padding for ordinary batch sizes ---------------------
    if B <= 512:
        tb, Bp = B, B                       # full-extent block, no pad, no extra HBM op
    else:
        tb = 256
        Bp = _round_up(B, tb)
        x = jnp.pad(x, ((0, Bp - B), (0, 0)))
        h = jnp.pad(h, ((0, Bp - B), (0, 0)))
    n_b = Bp // tb

    # ---- hidden tiling: prefer 256-aligned blocks (v6e/v7x MXU), 128 fallback ---
    tn = _pick_tile(Hp, 512, 256 if Hp % 256 == 0 else 128)
    if n_b == 1 and Hp // tn < 2 and Hp >= 256:
        tn = _pick_tile(Hp, Hp // 2, 128)   # >=2 hidden blocks so both v7x TCs get work

    # ---- VMEM budget (generation-aware); shrink tn if needed --------------------
    def vmem_est(tb_, tn_):
        return (2 * tb_ * In * xbytes + 2 * tb_ * H * hbytes     # x, h blocks (dbl-buf)
                + 2 * In * tn_ * cbytes + 2 * H * tn_ * cbytes   # weight blocks (dbl-buf)
                + 2 * tn_ * 4                                    # bias
                + 2 * tb_ * tn_ * obytes)                        # output blocks

    budget = max(_vmem_capacity_bytes() - (16 << 20), 24 << 20)
    while vmem_est(tb, tn) > budget and tn > 128:
        tn = _pick_tile(Hp, tn - 128, 128)
    # TODO(synk): for extremely large In/H even tn=128 may exceed VMEM; that regime
    # would need the K-streaming grid axis reintroduced.
    n_h = Hp // tn

    # ---- grid order: keep the larger operand single-pass from HBM ---------------
    w_bytes = (In + H) * Hp * cbytes
    act_bytes = Bp * (In * xbytes + H * hbytes)
    if w_bytes >= act_bytes:
        # hidden axis outer, batch inner: every weight block is DMA'd exactly once.
        grid = (n_h, n_b)
        x_spec = pl.BlockSpec((tb, In), lambda j, i: (i, 0))
        h_spec = pl.BlockSpec((tb, H), lambda j, i: (i, 0))
        wi_spec = pl.BlockSpec((In, tn), lambda j, i: (0, j))
        wh_spec = pl.BlockSpec((H, tn), lambda j, i: (0, j))
        b_spec = pl.BlockSpec((1, tn), lambda j, i: (0, j))
        o_spec = pl.BlockSpec((tb, tn), lambda j, i: (i, j))
    else:
        # batch outer, hidden inner: activations are DMA'd exactly once.
        grid = (n_b, n_h)
        x_spec = pl.BlockSpec((tb, In), lambda i, j: (i, 0))
        h_spec = pl.BlockSpec((tb, H), lambda i, j: (i, 0))
        wi_spec = pl.BlockSpec((In, tn), lambda i, j: (0, j))
        wh_spec = pl.BlockSpec((H, tn), lambda i, j: (0, j))
        b_spec = pl.BlockSpec((1, tn), lambda i, j: (0, j))
        o_spec = pl.BlockSpec((tb, tn), lambda i, j: (i, j))

    cost = pl.CostEstimate(
        flops=2 * Bp * (In + H) * Hp,
        transcendentals=0 if activation == "relu" else Bp * Hp,
        bytes_accessed=w_bytes + act_bytes + Hp * 4 + Bp * Hp * obytes)

    vmem_limit = int(min(max(2 * vmem_est(tb, tn) + (2 << 20), 8 << 20), budget))

    out_padded = pl.pallas_call(
        functools.partial(_rnncell_kernel, activation=activation),
        out_shape=jax.ShapeDtypeStruct((Bp, Hp), x.dtype),
        grid_spec=pltpu.PrefetchScalarGridSpec(
            num_scalar_prefetch=0,
            grid=grid,
            in_specs=[x_spec, h_spec, wi_spec, wh_spec, b_spec],
            out_specs=o_spec,
        ),
        compiler_params=pltpu.CompilerParams(
            dimension_semantics=("parallel", "parallel"),
            vmem_limit_bytes=vmem_limit,
        ),
        cost_estimate=cost,
    )(x, h, w_ih_p, w_hh_p, b_p)

    if Bp != B or Hp != hidden_size:
        return out_padded[:B, :hidden_size]
    return out_padded


class RnnCellPallas:
    """Pallas-TPU port of rnncells.RnnCell (forward only)."""

    def __init__(self, input_size, hidden_size, activation="tanh",
                 compute_dtype=jnp.bfloat16, key=None):
        if activation not in ("tanh", "relu", "sigmoid"):
            raise ValueError("Invalid nonlinearity selected for RNN. "
                             "Please use tanh, relu or sigmoid.")
        self.input_size = input_size
        self.hidden_size = hidden_size
        self.activation = activation
        self.compute_dtype = jnp.dtype(compute_dtype)

        if key is None:
            key = jax.random.PRNGKey(0)
        k1, k2, k3, k4 = jax.random.split(key, 4)
        std = 0.02  # init_weights_normal(): N(0, 0.02) for every parameter
        # nn.Linear convention: weight is [out_features, in_features].
        self.w_ih = std * jax.random.normal(k1, (hidden_size, input_size), jnp.float32)
        self.b_ih = std * jax.random.normal(k2, (hidden_size,), jnp.float32)
        self.w_hh = std * jax.random.normal(k3, (hidden_size, hidden_size), jnp.float32)
        self.b_hh = std * jax.random.normal(k4, (hidden_size,), jnp.float32)

        # ---- one-time parameter prep (hoisted out of __call__) -----------------
        # Transpose to [in, out], pad the output (lane) dim to a 128 multiple, cast
        # to the compute dtype, and pre-sum the two biases (f32).
        Hp = _round_up(hidden_size, 128)
        cdt = self.compute_dtype
        self._w_ih_p = (jnp.zeros((input_size, Hp), cdt)
                        .at[:, :hidden_size].set(self.w_ih.T.astype(cdt)))
        self._w_hh_p = (jnp.zeros((hidden_size, Hp), cdt)
                        .at[:, :hidden_size].set(self.w_hh.T.astype(cdt)))
        self._b_p = (jnp.zeros((1, Hp), jnp.float32)
                     .at[0, :hidden_size].set(self.b_ih + self.b_hh))

        # jit once; retraced only for new input shapes/dtypes.
        self._forward = jax.jit(functools.partial(
            _rnncell_forward, activation=activation, hidden_size=hidden_size))

    def __call__(self, x, carry=None, hidden_state=None):
        # Mirrors the PyTorch forward exactly: whenever hidden_state is None the
        # carry is (re)initialized to zeros, regardless of what was passed.
        if hidden_state is None:
            hidden_state = jnp.zeros((x.shape[0], self.hidden_size), dtype=x.dtype)
            carry = (hidden_state, hidden_state)
        h_t, _ = carry
        out = self._forward(x, h_t, self._w_ih_p, self._w_hh_p, self._b_p)
        return (out, out)


if __name__ == "__main__":
    key = jax.random.PRNGKey(0)
    k_param, k_x, k_h = jax.random.split(key, 3)

    batch, input_size, hidden_size = 2, 16, 32

    x = jax.random.normal(k_x, (batch, input_size), jnp.float32)
    h0 = jax.random.normal(k_h, (batch, hidden_size), jnp.float32)

    # bf16-compute cell (default) and an f32-compute cell with identical params.
    cell_bf16 = RnnCellPallas(input_size, hidden_size, activation="tanh", key=k_param)
    cell_f32 = RnnCellPallas(input_size, hidden_size, activation="tanh",
                             compute_dtype=jnp.float32, key=k_param)

    # Plain-JAX references (high precision).
    hp = jax.lax.Precision.HIGHEST
    pre = (jnp.dot(x, cell_f32.w_ih.T, precision=hp) + cell_f32.b_ih
           + jnp.dot(h0, cell_f32.w_hh.T, precision=hp) + cell_f32.b_hh)
    ref = jnp.tanh(pre)
    pre0 = jnp.dot(x, cell_f32.w_ih.T, precision=hp) + cell_f32.b_ih + cell_f32.b_hh
    ref0 = jnp.tanh(pre0)   # hidden-state-reset path (h = 0)

    # Explicit hidden_state -> the provided carry is used (PyTorch semantics).
    out_f32, _ = cell_f32(x, carry=(h0, h0), hidden_state=h0)
    out_f32 = jax.block_until_ready(out_f32)
    assert out_f32.shape == (batch, hidden_size)
    assert jnp.allclose(out_f32, ref, atol=1e-4, rtol=1e-4)

    out_bf16, out_bf16_dup = cell_bf16(x, carry=(h0, h0), hidden_state=h0)
    out_bf16 = jax.block_until_ready(out_bf16)
    assert out_bf16.shape == (batch, hidden_size)
    assert jnp.allclose(out_bf16, ref, atol=1e-2, rtol=1e-2)
    assert jnp.array_equal(out_bf16, out_bf16_dup)

    # hidden_state=None -> carry reset to zeros, exactly like the PyTorch module.
    out_none, _ = cell_bf16(x)
    out_none = jax.block_until_ready(out_none)
    assert out_none.shape == (batch, hidden_size)
    assert jnp.allclose(out_none, ref0, atol=1e-2, rtol=1e-2)

    print("KERNEL_OK")
</pallas_src>

<mosaic_0001>
module attributes {stable_mosaic.version = 11 : i64} {
  func.func @_rnncell_kernel(%arg0: i32, %arg1: i32, %arg2: memref<2x16xf32, #tpu.memory_space<vmem>>, %arg3: memref<2x32xf32, #tpu.memory_space<vmem>>, %arg4: memref<16x128xf32, #tpu.memory_space<vmem>>, %arg5: memref<32x128xf32, #tpu.memory_space<vmem>>, %arg6: memref<1x128xf32, #tpu.memory_space<vmem>>, %arg7: memref<2x128xf32, #tpu.memory_space<vmem>>) attributes {dimension_semantics = [#tpu.dimension_semantics<parallel>, #tpu.dimension_semantics<parallel>], iteration_bounds = array<i64: 1, 1>, scalar_prefetch = 0 : i64, scratch_operands = 0 : i64, tpu.core_type = #tpu.core_type<tc>, window_params = [{transform_indices = @transform_0, window_bounds = array<i64: 2, 16>}, {transform_indices = @transform_1, window_bounds = array<i64: 2, 32>}, {transform_indices = @transform_2, window_bounds = array<i64: 16, 128>}, {transform_indices = @transform_3, window_bounds = array<i64: 32, 128>}, {transform_indices = @transform_4, window_bounds = array<i64: 1, 128>}, {transform_indices = @transform_5, window_bounds = array<i64: 2, 128>}]} {
    %c0 = arith.constant 0 : index
    %c0_0 = arith.constant 0 : index
    %0 = vector.load %arg2[%c0, %c0_0] : memref<2x16xf32, #tpu.memory_space<vmem>>, vector<2x16xf32>
    %c0_1 = arith.constant 0 : index
    %c0_2 = arith.constant 0 : index
    %1 = vector.load %arg4[%c0_1, %c0_2] : memref<16x128xf32, #tpu.memory_space<vmem>>, vector<16x128xf32>
    %cst = arith.constant dense<0.000000e+00> : vector<2x128xf32>
    %2 = tpu.matmul %0, %1, %cst {dimension_numbers = #tpu.dot_dimension_numbers<[1], [0], [0], [1], [0, 0, 1, 1], [], []>} : vector<2x16xf32>, vector<16x128xf32>, vector<2x128xf32> -> vector<2x128xf32>
    %c0_3 = arith.constant 0 : index
    %c0_4 = arith.constant 0 : index
    %3 = vector.load %arg3[%c0_3, %c0_4] : memref<2x32xf32, #tpu.memory_space<vmem>>, vector<2x32xf32>
    %c0_5 = arith.constant 0 : index
    %c0_6 = arith.constant 0 : index
    %4 = vector.load %arg5[%c0_5, %c0_6] : memref<32x128xf32, #tpu.memory_space<vmem>>, vector<32x128xf32>
    %cst_7 = arith.constant dense<0.000000e+00> : vector<2x128xf32>
    %5 = tpu.matmul %3, %4, %cst_7 {dimension_numbers = #tpu.dot_dimension_numbers<[1], [0], [0], [1], [0, 0, 1, 1], [], []>} : vector<2x32xf32>, vector<32x128xf32>, vector<2x128xf32> -> vector<2x128xf32>
    %6 = arith.addf %2, %5 : vector<2x128xf32>
    %c0_8 = arith.constant 0 : index
    %c0_9 = arith.constant 0 : index
    %7 = vector.load %arg6[%c0_8, %c0_9] : memref<1x128xf32, #tpu.memory_space<vmem>>, vector<1x128xf32>
    %8 = vector.broadcast %7 : vector<1x128xf32> to vector<2x128xf32>
    %9 = arith.addf %6, %8 : vector<2x128xf32>
    %10 = math.tanh %9 : vector<2x128xf32>
    %c0_10 = arith.constant 0 : index
    %c0_11 = arith.constant 0 : index
    %11 = vector.load %arg7[%c0_10, %c0_11] : memref<2x128xf32, #tpu.memory_space<vmem>>, vector<2x128xf32>
    tpu.vector_store %arg7[%c0_10, %c0_11], %10 {strides = array<i32>} : memref<2x128xf32, #tpu.memory_space<vmem>>, vector<2x128xf32>,
    return
  }
  func.func @transform_0(%arg0: i32, %arg1: i32) -> (i32, i32) {
    %c0_i32 = arith.constant 0 : i32
    %c0_i32_0 = arith.constant 0 : i32
    return %arg1, %c0_i32 : i32, i32
  }
  func.func @transform_1(%arg0: i32, %arg1: i32) -> (i32, i32) {
    %c0_i32 = arith.constant 0 : i32
    %c0_i32_0 = arith.constant 0 : i32
    return %arg1, %c0_i32 : i32, i32
  }
  func.func @transform_2(%arg0: i32, %arg1: i32) -> (i32, i32) {
    %c0_i32 = arith.constant 0 : i32
    %c0_i32_0 = arith.constant 0 : i32
    return %c0_i32, %arg0 : i32, i32
  }
  func.func @transform_3(%arg0: i32, %arg1: i32) -> (i32, i32) {
    %c0_i32 = arith.constant 0 : i32
    %c0_i32_0 = arith.constant 0 : i32
    return %c0_i32, %arg0 : i32, i32
  }
  func.func @transform_4(%arg0: i32, %arg1: i32) -> (i32, i32) {
    %c0_i32 = arith.constant 0 : i32
    %c0_i32_0 = arith.constant 0 : i32
    return %c0_i32, %arg0 : i32, i32
  }
  func.func @transform_5(%arg0: i32, %arg1: i32) -> (i32, i32) {
    %c0_i32 = arith.constant 0 : i32
    return %arg1, %arg0 : i32, i32
  }
}

</mosaic_0001>

<llo_original>
// kernel: _rnncell_forward.1
$region0: #{_rnncell_forward.1}
  #allocation0 [shape = 'u32[]', space=smem, size = 0x4, offset = 0x4, fixed_abs, tag = 'smem constant byte address 0x4 - core index']
  #allocation1 [shape = 'u32[144,128]{1,0:T(1,128)}', space=vmem, size = 0x12000, scoped, tag = 'internal scratch']
  %s0 = inlined_call_operand.hbm [shape: f32[2,16], index: 0, kind: input, shape index: {}]
  %s1 = inlined_call_operand.vmem [shape: f32[2,32], index: 1, kind: input, shape index: {}]
  %s2 = inlined_call_operand.hbm [shape: f32[16,128], index: 2, kind: input, shape index: {}]
  %s3 = inlined_call_operand.hbm [shape: f32[32,128], index: 3, kind: input, shape index: {}]
  %s4 = inlined_call_operand.vmem [shape: f32[1,128], index: 4, kind: input, shape index: {}]
  %s5 = inlined_call_operand.hbm [shape: f32[2,128], index: 5, kind: output, shape index: {}]
  %s6 = sld [smem:[#allocation0]]
  $region42: #{_rnncell_forward.1} parent=0
    _
  %s8 = ssub.s32 1, %s6
  %s9 = scalar_select 0, %s8, %s6
  $region1: #{_rnncell_forward.1} parent=0
    #allocation2 [shape = 'u8[1024]{0}', space=vmem, size = 0x400, scoped, tag = 'input window, operand 0, single buffered']
    #allocation3 [shape = 's32[1]{0}', space=sflag, size = 0x4, scoped, tag = 'scoped memory for _rnncell_forward.1']
    #allocation4 [shape = 's32[1]{0}', space=sflag, size = 0x4, scoped, tag = 'scoped memory for _rnncell_forward.1']
    #allocation5 [shape = 'u8[8192]{0}', space=vmem, size = 0x2000, scoped, tag = 'input window, operand 2, single buffered']
    #allocation6 [shape = 's32[1]{0}', space=sflag, size = 0x4, scoped, tag = 'scoped memory for _rnncell_forward.1']
    #allocation7 [shape = 'u8[16384]{0}', space=vmem, size = 0x4000, scoped, tag = 'input window, operand 3, single buffered']
    #allocation8 [shape = 'u8[1024]{0}', space=vmem, size = 0x400, scoped, tag = 'output window, operand 0, single buffered']
    %10 = vsyncpa [#allocation3], 0
    %11 = vsyncpa [#allocation6], 0
    %12 = vsyncpa [#allocation4], 0
    // Predicated region
    $region2: #{_rnncell_forward.1} parent=1 // pred_check
      _
    $region3: #{_rnncell_forward.1} parent=1 // pred_check_branch
      %14 = sbr.rel (0) target = $region5
    $region4: #{_rnncell_forward.1} parent=1 // pred_region
      %s16 = ssub.s32 32, 32
      %17 = vsyncadd [#allocation3], %s16
      %s19 = sshll.u32 [#allocation2], 4
      %s20 = int_to_ptr.vmem [resolvable:$true] %s19
      %22 = dma.hbm_to_vmem [thread:$0]  %s0, 32, %s20, [#allocation3]
    $region5: #{_rnncell_forward.1} parent=1 // pred_fallthru
      _
    // Predicated region
    $region6: #{_rnncell_forward.1} parent=1 // pred_check
      _
    $region7: #{_rnncell_forward.1} parent=1 // pred_check_branch
      %24 = sbr.rel (0) target = $region9
    $region8: #{_rnncell_forward.1} parent=1 // pred_region
      _
    $region9: #{_rnncell_forward.1} parent=1 // pred_fallthru
      _
    // Predicated region
    $region10: #{_rnncell_forward.1} parent=1 // pred_check
      _
    $region11: #{_rnncell_forward.1} parent=1 // pred_check_branch
      %26 = sbr.rel (0) target = $region13
    $region12: #{_rnncell_forward.1} parent=1 // pred_region
      %s28 = ssub.s32 256, 256
      %29 = vsyncadd [#allocation6], %s28
      %s30 = sshll.u32 [#allocation5], 4
      %s31 = int_to_ptr.vmem [resolvable:$true] %s30
      %36 = dma.hbm_to_vmem [thread:$0]  %s2, 256, %s31, [#allocation6], 128, 128, 8
    $region13: #{_rnncell_forward.1} parent=1 // pred_fallthru
      _
    // Predicated region
    $region14: #{_rnncell_forward.1} parent=1 // pred_check
      _
    $region15: #{_rnncell_forward.1} parent=1 // pred_check_branch
      %38 = sbr.rel (0) target = $region17
    $region16: #{_rnncell_forward.1} parent=1 // pred_region
      %s40 = ssub.s32 512, 512
      %41 = vsyncadd [#allocation6], %s40
      %s42 = sshll.u32 [#allocation7], 4
      %s43 = int_to_ptr.vmem [resolvable:$true] %s42
      %48 = dma.hbm_to_vmem [thread:$0]  %s3, 512, %s43, [#allocation6], 128, 128, 8
    $region17: #{_rnncell_forward.1} parent=1 // pred_fallthru
      _
    // Predicated region
    $region18: #{_rnncell_forward.1} parent=1 // pred_check
      _
    $region19: #{_rnncell_forward.1} parent=1 // pred_check_branch
      %50 = sbr.rel (0) target = $region21
    $region20: #{_rnncell_forward.1} parent=1 // pred_region
      _
    $region21: #{_rnncell_forward.1} parent=1 // pred_fallthru
      _
    // Predicated region
    $region22: #{_rnncell_forward.1} parent=1 // pred_check
      _
    $region23: #{_rnncell_forward.1} parent=1 // pred_check_branch
      %52 = sbr.rel (0) target = $region25
    $region24: #{_rnncell_forward.1} parent=1 // pred_region
      %53 = dma.done [#allocation3], 32
    $region25: #{_rnncell_forward.1} parent=1 // pred_fallthru
      _
    // Predicated region
    $region26: #{_rnncell_forward.1} parent=1 // pred_check
      _
    $region27: #{_rnncell_forward.1} parent=1 // pred_check_branch
      %55 = sbr.rel (0) target = $region29
    $region28: #{_rnncell_forward.1} parent=1 // pred_region
      %56 = dma.done [#allocation6], 256
    $region29: #{_rnncell_forward.1} parent=1 // pred_fallthru
      _
    // Predicated region
    $region30: #{_rnncell_forward.1} parent=1 // pred_check
      _
    $region31: #{_rnncell_forward.1} parent=1 // pred_check_branch
      %58 = sbr.rel (0) target = $region33
    $region32: #{_rnncell_forward.1} parent=1 // pred_region
      %59 = dma.done [#allocation6], 512
    $region33: #{_rnncell_forward.1} parent=1 // pred_fallthru
      _
    %v60 = vld [vmem:[#allocation2] sm:$0x3]
    %v61 = vld [vmem:[#allocation5] sm:$0xff]
    %v62 = vld [vmem:[#allocation5 + $0x8] sm:$0xff]
    %v63 = vld [vmem:[%s1] sm:$0x3]
    %v64 = vld [vmem:[#allocation7] sm:$0xff]
    %v65 = vld [vmem:[#allocation7 + $0x8] sm:$0xff]
    %v66 = vld [vmem:[#allocation7 + $0x10] sm:$0xff]
    %v67 = vld [vmem:[#allocation7 + $0x18] sm:$0xff]
    %vm68 = vcmask 261120
    %v70 = vsel %vm68, %v63, 0
    %72 = vmatprep.subr.mxu0 0.0
    %73 = vmatpush1.msra.mxu0 %v64
    %74 = vmatprep.subr.mxu0 0.0
    %75 = vmatpush1.msra.mxu0 %v65
    %76 = vmatprep.subr.mxu0 0.0
    %77 = vmatpush1.msra.mxu0 %v66
    %78 = vmatprep.subr.mxu0 0.0
    %79 = vmatpush1.msra.mxu0 %v67
    %80 = vmatprep.subr.mxu0 0.0
    %81 = vmatpush1.msra.mxu0 0.0
    %82 = vmatprep.subr.mxu0 0.0
    %83 = vmatpush1.msra.mxu0 0.0
    %84 = vmatprep.subr.mxu0 0.0
    %85 = vmatpush1.msra.mxu0 0.0
    %86 = vmatprep.subr.mxu0 0.0
    %87 = vmatpush1.msra.mxu0 0.0
    %88 = vmatprep.subr.mxu0 0.0
    %89 = vmatpush1.msra.mxu0 0.0
    %90 = vmatprep.subr.mxu0 0.0
    %91 = vmatpush1.msra.mxu0 0.0
    %92 = vmatprep.subr.mxu0 0.0
    %93 = vmatpush1.msra.mxu0 0.0
    %94 = vmatprep.subr.mxu0 0.0
    %95 = vmatpush1.msra.mxu0 0.0
    %96 = vmatprep.subr.mxu0 0.0
    %97 = vmatpush1.msra.mxu0 0.0
    %98 = vmatprep.subr.mxu0 0.0
    %99 = vmatpush1.msra.mxu0 0.0
    %100 = vmatprep.subr.mxu0 0.0
    %101 = vmatpush1.msra.mxu0 0.0
    %102 = vmatprep.subr.mxu0 0.0
    %103 = vmatpush1.msra.mxu0 0.0
    %104 = vmatprep.subr.mxu0 0.0
    %105 = vmatpush1.msra.mxu0 0.0
    %106 = vmatprep.subr.mxu0 0.0
    %107 = vmatpush1.msra.mxu0 0.0
    %108 = vmatprep.subr.mxu0 0.0
    %109 = vmatpush1.msra.mxu0 0.0
    %110 = vmatprep.subr.mxu0 0.0
    %111 = vmatpush1.msra.mxu0 0.0
    %112 = vmatprep.subr.mxu0 0.0
    %113 = vmatpush1.msra.mxu0 0.0
    %114 = vmatprep.subr.mxu0 0.0
    %115 = vmatpush1.msra.mxu0 0.0
    %116 = vmatprep.subr.mxu0 0.0
    %117 = vmatpush1.msra.mxu0 0.0
    %118 = vmatprep.subr.mxu0 0.0
    %119 = vmatpush1.msra.mxu0 0.0
    %120 = vmatprep.subr.mxu0 0.0
    %121 = vmatpush1.msra.mxu0 0.0
    %122 = vmatprep.subr.mxu0 0.0
    %123 = vmatpush1.msra.mxu0 0.0
    %124 = vmatprep.subr.mxu0 0.0
    %125 = vmatpush1.msra.mxu0 0.0
    %126 = vmatprep.subr.mxu0 0.0
    %127 = vmatpush1.msra.mxu0 0.0
    %128 = vmatprep.subr.mxu0 0.0
    %129 = vmatpush1.msra.mxu0 0.0
    %130 = vmatprep.subr.mxu0 0.0
    %131 = vmatpush1.msra.mxu0 0.0
    %132 = vmatprep.subr.mxu0 0.0
    %133 = vmatpush1.msra.mxu0 0.0
    %134 = vmatprep.subr.mxu0 0.0
    %135 = vmatpush1.msra.mxu0 0.0
    %136 = vmatprep.mubr.f32.mxu0 0.0
    %137 = vmatmul.mubr.f32.gmra.mrb[0].mxu0 %v70
    %v138 = vpop.f32.mrb[0].mxu0
    %v139 = vadd.f32 0.0, %v138
    %v140 = vpop.f32.mrb[0].mxu0
    %141 = vdwg.mxu0
    %vm142 = vcmask 130048
    %v144 = vsel %vm142, %v60, 0
    %146 = vmatprep.subr.mxu0 0.0
    %147 = vmatpush1.msra.mxu0 %v61
    %148 = vmatprep.subr.mxu0 0.0
    %149 = vmatpush1.msra.mxu0 %v62
    %150 = vmatprep.subr.mxu0 0.0
    %151 = vmatpush1.msra.mxu0 0.0
    %152 = vmatprep.subr.mxu0 0.0
    %153 = vmatpush1.msra.mxu0 0.0
    %154 = vmatprep.subr.mxu0 0.0
    %155 = vmatpush1.msra.mxu0 0.0
    %156 = vmatprep.subr.mxu0 0.0
    %157 = vmatpush1.msra.mxu0 0.0
    %158 = vmatprep.subr.mxu0 0.0
    %159 = vmatpush1.msra.mxu0 0.0
    %160 = vmatprep.subr.mxu0 0.0
    %161 = vmatpush1.msra.mxu0 0.0
    %162 = vmatprep.subr.mxu0 0.0
    %163 = vmatpush1.msra.mxu0 0.0
    %164 = vmatprep.subr.mxu0 0.0
    %165 = vmatpush1.msra.mxu0 0.0
    %166 = vmatprep.subr.mxu0 0.0
    %167 = vmatpush1.msra.mxu0 0.0
    %168 = vmatprep.subr.mxu0 0.0
    %169 = vmatpush1.msra.mxu0 0.0
    %170 = vmatprep.subr.mxu0 0.0
    %171 = vmatpush1.msra.mxu0 0.0
    %172 = vmatprep.subr.mxu0 0.0
    %173 = vmatpush1.msra.mxu0 0.0
    %174 = vmatprep.subr.mxu0 0.0
    %175 = vmatpush1.msra.mxu0 0.0
    %176 = vmatprep.subr.mxu0 0.0
    %177 = vmatpush1.msra.mxu0 0.0
    %178 = vmatprep.subr.mxu0 0.0
    %179 = vmatpush1.msra.mxu0 0.0
    %180 = vmatprep.subr.mxu0 0.0
    %181 = vmatpush1.msra.mxu0 0.0
    %182 = vmatprep.subr.mxu0 0.0
    %183 = vmatpush1.msra.mxu0 0.0
    %184 = vmatprep.subr.mxu0 0.0
    %185 = vmatpush1.msra.mxu0 0.0
    %186 = vmatprep.subr.mxu0 0.0
    %187 = vmatpush1.msra.mxu0 0.0
    %188 = vmatprep.subr.mxu0 0.0
    %189 = vmatpush1.msra.mxu0 0.0
    %190 = vmatprep.subr.mxu0 0.0
    %191 = vmatpush1.msra.mxu0 0.0
    %192 = vmatprep.subr.mxu0 0.0
    %193 = vmatpush1.msra.mxu0 0.0
    %194 = vmatprep.subr.mxu0 0.0
    %195 = vmatpush1.msra.mxu0 0.0
    %196 = vmatprep.subr.mxu0 0.0
    %197 = vmatpush1.msra.mxu0 0.0
    %198 = vmatprep.subr.mxu0 0.0
    %199 = vmatpush1.msra.mxu0 0.0
    %200 = vmatprep.subr.mxu0 0.0
    %201 = vmatpush1.msra.mxu0 0.0
    %202 = vmatprep.subr.mxu0 0.0
    %203 = vmatpush1.msra.mxu0 0.0
    %204 = vmatprep.subr.mxu0 0.0
    %205 = vmatpush1.msra.mxu0 0.0
    %206 = vmatprep.subr.mxu0 0.0
    %207 = vmatpush1.msra.mxu0 0.0
    %208 = vmatprep.subr.mxu0 0.0
    %209 = vmatpush1.msra.mxu0 0.0
    %210 = vmatprep.mubr.f32.mxu0 0.0
    %211 = vmatmul.mubr.f32.gmra.mrb[0].mxu0 %v144
    %v212 = vpop.f32.mrb[0].mxu0
    %v213 = vadd.f32 %v139, %v212
    %v214 = vpop.f32.mrb[0].mxu0
    %215 = vdwg.mxu0
    %v216 = vld [vmem:[%s4] sm:$0x1]
    %v218 = vlaneseq
    %v219 = vshrl.u32 %v218, 7
    %v220 = vsub.s32 0, %v219
    %v221 = vrot.slane %v216, %v220
    %v223 = vadd.f32 %v213, %v221
    %v224 = vtanh.pop %v223
    %225 = vst [vmem:[#allocation8] sm:$0x3] %v224
    // Predicated region
    $region34: #{_rnncell_forward.1} parent=1 // pred_check
      _
    $region35: #{_rnncell_forward.1} parent=1 // pred_check_branch
      %227 = sbr.rel (0) target = $region37
    $region36: #{_rnncell_forward.1} parent=1 // pred_region
      %s229 = ssub.s32 32, 32
      %230 = vsyncadd [#allocation4], %s229
      %s232 = sshll.u32 [#allocation8], 4
      %s233 = int_to_ptr.vmem [resolvable:$true] %s232
      %235 = dma.vmem_to_hbm [thread:$0]  %s233, 32, %s5, [#allocation4]
    $region37: #{_rnncell_forward.1} parent=1 // pred_fallthru
      _
    // Predicated region
    $region38: #{_rnncell_forward.1} parent=1 // pred_check
      _
    $region39: #{_rnncell_forward.1} parent=1 // pred_check_branch
      %237 = sbr.rel (0) target = $region41
    $region40: #{_rnncell_forward.1} parent=1 // pred_region
      %238 = dma.done [#allocation4], 32
    $region41: #{_rnncell_forward.1} parent=1 // pred_fallthru
      _
    %239 = vsyncpa [#allocation3], 1
    %240 = vsyncpa [#allocation6], 1
    %241 = vsyncpa [#allocation4], 1

</llo_original>
